<compile_context>
chip_gen: v7x
topology: tpu7x:2x2x1
jax: 0.10.0
libtpu: 0.0.40
codegen_flags: <defaults>
</compile_context>

<pallas_src>
import jax
import jax.numpy as jnp
from jax.experimental import pallas as pl
from jax.experimental.pallas import tpu as pltpu

_BN_EPS = 1e-5


def _round_up(x, m):
    return ((x + m - 1) // m) * m


def _vmem_budget_bytes():
    """~75% of physical per-core VMEM (cap 96 MiB); conservative 48 MiB fallback."""
    try:
        phys = pltpu.get_tpu_info().vmem_capacity_bytes
    except Exception:
        phys = 64 * 1024 * 1024  # v7x per-TC physical: be conservative
    return int(min((phys * 3) // 4, 96 * 1024 * 1024))


def ds_ff_kernel(x_ref, w_ref, gamma_ref, beta_ref, o_ref, acc_ref):
    """Grid = (J feature tiles ["parallel"], K Fin tiles ["arbitrary" reduction])."""
    k = pl.program_id(1)

    @pl.when(k == 0)
    def _():
        acc_ref[...] = jnp.zeros_like(acc_ref)

    # MXU matmul: bf16 inputs, f32 accumulation. x arrives bf16 from the wrapper
    # (no redundant cast of a grid-invariant block); each W tile is cast exactly
    # once (its block index changes every grid step), and it is a no-op if W is
    # already stored bf16.
    acc_ref[...] += jnp.dot(
        x_ref[...],
        w_ref[...].astype(jnp.bfloat16),
        preferred_element_type=jnp.float32,
    )

    @pl.when(k == pl.num_programs(1) - 1)
    def _():
        h = acc_ref[...]                                     # (N, TN) f32
        inv_n = jnp.float32(1.0 / h.shape[0])
        # Exact, centered batch statistics (biased variance, matches PyTorch BN
        # training mode). Centering avoids E[h^2]-mean^2 cancellation.
        mean = jnp.sum(h, axis=0, keepdims=True) * inv_n     # (1, TN)
        hc = h - mean
        var = jnp.sum(hc * hc, axis=0, keepdims=True) * inv_n
        scale = gamma_ref[...] * jax.lax.rsqrt(var + jnp.float32(_BN_EPS))
        o_ref[...] = jnp.maximum(hc * scale + beta_ref[...], 0.0).astype(o_ref.dtype)


def ds_ff_forward(x, w, b, gamma, beta, *, out_dtype=jnp.float32):
    """y = ReLU(BatchNorm1d(x @ w + b)), training-mode BN statistics.

    x:      (N, Fin)   f32/bf16
    w:      (Fin, Fout) f32 or bf16 (Linear weight, pre-transposed)
    b:      (1, Fout)   Linear bias -- mathematically cancelled by training-mode BN
    gamma:  (1, Fout)   BN weight
    beta:   (1, Fout)   BN bias
    """
    del b  # per-column constant before BatchNorm is cancelled by mean subtraction
    n, f_in = x.shape
    f_out = w.shape[1]

    # x participates in every feature tile -> one bf16 copy, cast once here.
    x = x.astype(jnp.bfloat16)
    gamma = gamma.reshape(1, f_out).astype(jnp.float32)
    beta = beta.reshape(1, f_out).astype(jnp.float32)
    w_itemsize = jnp.dtype(w.dtype).itemsize

    budget = _vmem_budget_bytes()

    # ---------------- feature (lane) tile: multiple of 128, generation-aware ----
    f_out128 = _round_up(f_out, 128)
    tn = 1024 if budget >= 80 * 1024 * 1024 else 512       # v5e/v6e vs v7x
    tn = min(tn, f_out128)
    # Keep >=2 feature tiles (ideally 4) when possible: restores W-DMA pipelining
    # and lets v7x use both TensorCores.
    if f_out128 >= 2 * 128:
        tn = min(tn, _round_up(pl.cdiv(f_out128, 2), 128))
    if f_out128 >= 4 * 256:
        tn = min(tn, _round_up(pl.cdiv(f_out128, 4), 128))

    def _fixed_bytes(tn_):
        # out double-buffer + f32 accumulator + epilogue temporaries + gamma/beta
        return 2 * n * tn_ * 4 + n * tn_ * 4 + 2 * n * tn_ * 4 + 4 * tn_ * 4 + (64 << 10)

    while tn > 128 and _fixed_bytes(tn) > (budget * 9) // 10:
        tn = max(128, ((tn // 2) // 128) * 128)

    # ---------------- contraction (Fin) tile ------------------------------------
    avail = (budget * 9) // 10 - _fixed_bytes(tn)
    per_tk_resident = n * 2 + 2 * tn * w_itemsize          # bf16 x single-buffered + W dbuf
    if avail > 0 and f_in * per_tk_resident <= avail:
        tk, n_k = f_in, 1
    else:
        per_tk_tiled = 2 * n * 2 + 2 * tn * w_itemsize     # bf16 x double-buffered + W dbuf
        tk = 128
        if avail > 0:
            tk = max(128, min((avail // per_tk_tiled) // 128 * 128,
                              _round_up(f_in, 128)))
        n_k = pl.cdiv(f_in, tk)
        if n_k == 1:
            tk = f_in

    # Zero-pad the contraction axis only when K-tiling needs it (exact math).
    f_in_pad = n_k * tk
    if f_in_pad != f_in:
        x = jnp.pad(x, ((0, 0), (0, f_in_pad - f_in)))
        w = jnp.pad(w, ((0, f_in_pad - f_in), (0, 0)))

    # Output padded to a tn multiple (lane-dense unmasked stores); W is NOT padded
    # along Fout -- its ragged last tile only feeds output columns >= Fout, which
    # are sliced away below. gamma/beta pads are O(Fout) scalars (negligible).
    f_pad = _round_up(f_out, tn)
    if f_pad != f_out:
        gamma = jnp.pad(gamma, ((0, 0), (0, f_pad - f_out)))
        beta = jnp.pad(beta, ((0, 0), (0, f_pad - f_out)))

    if n_k == 1:
        # Grid-invariant block: single buffer (default double-buffering would just
        # double its VMEM footprint).
        x_spec = pl.BlockSpec((n, tk), lambda j, k: (0, 0),
                              pipeline_mode=pl.Buffered(1))
    else:
        x_spec = pl.BlockSpec((n, tk), lambda j, k: (0, k))

    grid = (f_pad // tn, n_k)

    cost = pl.CostEstimate(
        flops=2 * n * f_in_pad * f_pad,
        transcendentals=f_pad,
        bytes_accessed=(x.size * x.dtype.itemsize
                        + w.size * w.dtype.itemsize
                        + gamma.size * 4 + beta.size * 4
                        + n * f_pad * jnp.dtype(out_dtype).itemsize),
    )

    out = pl.pallas_call(
        ds_ff_kernel,
        out_shape=jax.ShapeDtypeStruct((n, f_pad), out_dtype),
        grid_spec=pltpu.PrefetchScalarGridSpec(
            num_scalar_prefetch=0,
            grid=grid,
            in_specs=[
                x_spec,                                        # x (resident or K-tiled)
                pl.BlockSpec((tk, tn), lambda j, k: (k, j)),   # W tile
                pl.BlockSpec((1, tn), lambda j, k: (0, j)),    # gamma tile
                pl.BlockSpec((1, tn), lambda j, k: (0, j)),    # beta tile
            ],
            out_specs=pl.BlockSpec((n, tn), lambda j, k: (0, j)),
            scratch_shapes=[pltpu.VMEM((n, tn), jnp.float32)],  # f32 accumulator
        ),
        compiler_params=pltpu.CompilerParams(
            dimension_semantics=("parallel", "arbitrary"),
            vmem_limit_bytes=int(budget),
        ),
        cost_estimate=cost,
    )(x, w, gamma, beta)
    return out[:, :f_out]


def ds_ff_reference(x, w, b, gamma, beta):
    """Exact f32 module semantics: Linear(+bias) -> BN1d (batch stats) -> ReLU."""
    h = x @ w + b
    mean = jnp.mean(h, axis=0, keepdims=True)
    var = jnp.mean((h - mean) ** 2, axis=0, keepdims=True)
    y = gamma * (h - mean) * jax.lax.rsqrt(var + _BN_EPS) + beta
    return jnp.maximum(y, 0.0)


def ds_ff_reference_matched(x, w, gamma, beta):
    """Reference using the same bf16-matmul / centered-stats math as the kernel."""
    h = jnp.dot(x.astype(jnp.bfloat16), w.astype(jnp.bfloat16),
                preferred_element_type=jnp.float32)
    mean = jnp.mean(h, axis=0, keepdims=True)
    hc = h - mean
    var = jnp.mean(hc * hc, axis=0, keepdims=True)
    scale = gamma * jax.lax.rsqrt(var + _BN_EPS)
    return jnp.maximum(hc * scale + beta, 0.0)


if __name__ == "__main__":
    # Small shapes consistent with the module's forward (Linear -> BN1d -> ReLU).
    batch = 8
    in_features = 32
    out_features = 64
    # num_classes / aux_classifier / threshold / train() are unused in forward().

    key = jax.random.PRNGKey(0)
    kx, kw, kb = jax.random.split(key, 3)

    x = jax.random.normal(kx, (batch, in_features), dtype=jnp.float32)

    # Deterministic parameter init (PyTorch Linear-style uniform bounds).
    bound = 1.0 / jnp.sqrt(jnp.float32(in_features))
    w = jax.random.uniform(kw, (in_features, out_features),
                           minval=-bound, maxval=bound, dtype=jnp.float32)
    b = jax.random.uniform(kb, (1, out_features),
                           minval=-bound, maxval=bound, dtype=jnp.float32)
    gamma = jnp.ones((1, out_features), dtype=jnp.float32)   # BN weight
    beta = jnp.zeros((1, out_features), dtype=jnp.float32)   # BN bias

    out = jax.block_until_ready(ds_ff_forward(x, w, b, gamma, beta))
    assert out.shape == (batch, out_features)

    # Tight check against a reference using identical (bf16-matmul) math.
    ref_matched = ds_ff_reference_matched(x, w, gamma, beta)
    assert jnp.allclose(out, ref_matched, atol=2e-3, rtol=2e-3), \
        "mismatch vs matched (bf16 matmul) reference"

    # Looser check against exact f32 PyTorch-module semantics (bf16 MXU inputs
    # introduce ~0.3% relative error before BN normalization).
    ref_f32 = ds_ff_reference(x, w, b, gamma, beta)
    assert jnp.allclose(out, ref_f32, atol=5e-2, rtol=5e-2), \
        "mismatch vs exact f32 module reference"

    print("KERNEL_OK")
</pallas_src>

<mosaic_0001>
module attributes {stable_mosaic.version = 11 : i64} {
  func.func @ds_ff_kernel(%arg0: i32, %arg1: i32, %arg2: memref<8x32xbf16, #tpu.memory_space<vmem>>, %arg3: memref<32x128xf32, #tpu.memory_space<vmem>>, %arg4: memref<1x128xf32, #tpu.memory_space<vmem>>, %arg5: memref<1x128xf32, #tpu.memory_space<vmem>>, %arg6: memref<8x128xf32, #tpu.memory_space<vmem>>, %arg7: memref<8x128xf32, #tpu.memory_space<vmem>>) attributes {dimension_semantics = [#tpu.dimension_semantics<parallel>, #tpu.dimension_semantics<arbitrary>], iteration_bounds = array<i64: 1, 1>, scalar_prefetch = 0 : i64, scratch_operands = 1 : i64, tpu.core_type = #tpu.core_type<tc>, window_params = [{pipeline_mode = #tpu.pipeline_mode<synchronous>, transform_indices = @transform_0, window_bounds = array<i64: 8, 32>}, {transform_indices = @transform_1, window_bounds = array<i64: 32, 128>}, {transform_indices = @transform_2, window_bounds = array<i64: 1, 128>}, {transform_indices = @transform_3, window_bounds = array<i64: 1, 128>}, {transform_indices = @transform_4, window_bounds = array<i64: 8, 128>}]} {
    %c0_i32 = arith.constant 0 : i32
    %0 = arith.cmpi eq, %arg1, %c0_i32 : i32
    %1 = arith.extui %0 : i1 to i32
    %c0_i32_0 = arith.constant 0 : i32
    %2 = arith.cmpi ne, %1, %c0_i32_0 : i32
    scf.if %2 {
      %cst_10 = arith.constant 0.000000e+00 : f32
      %13 = vector.broadcast %cst_10 : f32 to vector<8x128xf32>
      %c0_11 = arith.constant 0 : index
      %c0_12 = arith.constant 0 : index
      %14 = vector.load %arg7[%c0_11, %c0_12] : memref<8x128xf32, #tpu.memory_space<vmem>>, vector<8x128xf32>
      tpu.vector_store %arg7[%c0_11, %c0_12], %13 {strides = array<i32>} : memref<8x128xf32, #tpu.memory_space<vmem>>, vector<8x128xf32>,
    } else {
    }
    %c0 = arith.constant 0 : index
    %c0_1 = arith.constant 0 : index
    %3 = vector.load %arg7[%c0, %c0_1] : memref<8x128xf32, #tpu.memory_space<vmem>>, vector<8x128xf32>
    %c0_2 = arith.constant 0 : index
    %c0_3 = arith.constant 0 : index
    %4 = vector.load %arg2[%c0_2, %c0_3] : memref<8x32xbf16, #tpu.memory_space<vmem>>, vector<8x32xbf16>
    %c0_4 = arith.constant 0 : index
    %c0_5 = arith.constant 0 : index
    %5 = vector.load %arg3[%c0_4, %c0_5] : memref<32x128xf32, #tpu.memory_space<vmem>>, vector<32x128xf32>
    %6 = arith.truncf %5 : vector<32x128xf32> to vector<32x128xbf16>
    %cst = arith.constant dense<0.000000e+00> : vector<8x128xf32>
    %7 = tpu.matmul %4, %6, %cst {dimension_numbers = #tpu.dot_dimension_numbers<[1], [0], [0], [1], [0, 0, 1, 1], [], []>} : vector<8x32xbf16>, vector<32x128xbf16>, vector<8x128xf32> -> vector<8x128xf32>
    %8 = arith.addf %3, %7 : vector<8x128xf32>
    %c0_6 = arith.constant 0 : index
    %c0_7 = arith.constant 0 : index
    %9 = vector.load %arg7[%c0_6, %c0_7] : memref<8x128xf32, #tpu.memory_space<vmem>>, vector<8x128xf32>
    tpu.vector_store %arg7[%c0_6, %c0_7], %8 {strides = array<i32>} : memref<8x128xf32, #tpu.memory_space<vmem>>, vector<8x128xf32>,
    %c0_i32_8 = arith.constant 0 : i32
    %10 = arith.cmpi eq, %arg1, %c0_i32_8 : i32
    %11 = arith.extui %10 : i1 to i32
    %c0_i32_9 = arith.constant 0 : i32
    %12 = arith.cmpi ne, %11, %c0_i32_9 : i32
    scf.if %12 {
      %c0_10 = arith.constant 0 : index
      %c0_11 = arith.constant 0 : index
      %13 = vector.load %arg7[%c0_10, %c0_11] : memref<8x128xf32, #tpu.memory_space<vmem>>, vector<8x128xf32>
      %cst_12 = arith.constant dense<0.000000e+00> : vector<128xf32>
      %14 = vector.multi_reduction <add>, %13, %cst_12 [0] : vector<8x128xf32> to vector<128xf32>
      %15 = vector.shape_cast %14 : vector<128xf32> to vector<1x128xf32>
      %cst_13 = arith.constant 1.250000e-01 : f32
      %16 = vector.broadcast %cst_13 : f32 to vector<1x128xf32>
      %17 = arith.mulf %15, %16 : vector<1x128xf32>
      %18 = vector.broadcast %17 : vector<1x128xf32> to vector<8x128xf32>
      %19 = arith.subf %13, %18 : vector<8x128xf32>
      %20 = arith.mulf %19, %19 : vector<8x128xf32>
      %cst_14 = arith.constant dense<0.000000e+00> : vector<128xf32>
      %21 = vector.multi_reduction <add>, %20, %cst_14 [0] : vector<8x128xf32> to vector<128xf32>
      %22 = vector.shape_cast %21 : vector<128xf32> to vector<1x128xf32>
      %cst_15 = arith.constant 1.250000e-01 : f32
      %23 = vector.broadcast %cst_15 : f32 to vector<1x128xf32>
      %24 = arith.mulf %22, %23 : vector<1x128xf32>
      %c0_16 = arith.constant 0 : index
      %c0_17 = arith.constant 0 : index
      %25 = vector.load %arg4[%c0_16, %c0_17] : memref<1x128xf32, #tpu.memory_space<vmem>>, vector<1x128xf32>
      %cst_18 = arith.constant 9.99999974E-6 : f32
      %26 = vector.broadcast %cst_18 : f32 to vector<1x128xf32>
      %27 = arith.addf %24, %26 : vector<1x128xf32>
      %28 = math.rsqrt %27 : vector<1x128xf32>
      %29 = arith.mulf %25, %28 : vector<1x128xf32>
      %30 = vector.broadcast %29 : vector<1x128xf32> to vector<8x128xf32>
      %31 = arith.mulf %19, %30 : vector<8x128xf32>
      %c0_19 = arith.constant 0 : index
      %c0_20 = arith.constant 0 : index
      %32 = vector.load %arg5[%c0_19, %c0_20] : memref<1x128xf32, #tpu.memory_space<vmem>>, vector<1x128xf32>
      %33 = vector.broadcast %32 : vector<1x128xf32> to vector<8x128xf32>
      %34 = arith.addf %31, %33 : vector<8x128xf32>
      %cst_21 = arith.constant 0.000000e+00 : f32
      %35 = vector.broadcast %cst_21 : f32 to vector<8x128xf32>
      %36 = arith.maximumf %34, %35 : vector<8x128xf32>
      %c0_22 = arith.constant 0 : index
      %c0_23 = arith.constant 0 : index
      %37 = vector.load %arg6[%c0_22, %c0_23] : memref<8x128xf32, #tpu.memory_space<vmem>>, vector<8x128xf32>
      tpu.vector_store %arg6[%c0_22, %c0_23], %36 {strides = array<i32>} : memref<8x128xf32, #tpu.memory_space<vmem>>, vector<8x128xf32>,
    } else {
    }
    return
  }
  func.func @transform_0(%arg0: i32, %arg1: i32) -> (i32, i32) {
    %c0_i32 = arith.constant 0 : i32
    %c0_i32_0 = arith.constant 0 : i32
    %c0_i32_1 = arith.constant 0 : i32
    return %c0_i32, %c0_i32_0 : i32, i32
  }
  func.func @transform_1(%arg0: i32, %arg1: i32) -> (i32, i32) {
    %c0_i32 = arith.constant 0 : i32
    return %arg1, %arg0 : i32, i32
  }
  func.func @transform_2(%arg0: i32, %arg1: i32) -> (i32, i32) {
    %c0_i32 = arith.constant 0 : i32
    %c0_i32_0 = arith.constant 0 : i32
    return %c0_i32, %arg0 : i32, i32
  }
  func.func @transform_3(%arg0: i32, %arg1: i32) -> (i32, i32) {
    %c0_i32 = arith.constant 0 : i32
    %c0_i32_0 = arith.constant 0 : i32
    return %c0_i32, %arg0 : i32, i32
  }
  func.func @transform_4(%arg0: i32, %arg1: i32) -> (i32, i32) {
    %c0_i32 = arith.constant 0 : i32
    %c0_i32_0 = arith.constant 0 : i32
    return %c0_i32, %arg0 : i32, i32
  }
}

</mosaic_0001>

<llo_original>
// kernel: tpu_custom_call.1
$region0: #{tpu_custom_call.1}
  #allocation0 [shape = 'u32[]', space=smem, size = 0x4, offset = 0x4, fixed_abs, tag = 'smem constant byte address 0x4 - core index']
  #allocation1 [shape = 'u32[144,128]{1,0:T(1,128)}', space=vmem, size = 0x12000, scoped, tag = 'internal scratch']
  #allocation2 [shape = 'f32[8,128]{1,0:T(8,128)}', space=vmem, size = 0x1000, scoped, tag = 'scratch operand']
  %s0 = inlined_call_operand.hbm [shape: bf16[8,32], index: 0, kind: input, shape index: {}]
  %s1 = inlined_call_operand.hbm [shape: f32[32,64], index: 1, kind: input, shape index: {}]
  %s2 = inlined_call_operand.vmem [shape: f32[1,128], index: 2, kind: input, shape index: {}]
  %s3 = inlined_call_operand.vmem [shape: f32[1,128], index: 3, kind: input, shape index: {}]
  %s4 = inlined_call_operand.hbm [shape: f32[8,128], index: 4, kind: output, shape index: {}]
  %s5 = sld [smem:[#allocation0]]
  $region42: #{tpu_custom_call.1} parent=0
    _
  %s7 = ssub.s32 1, %s5
  %s8 = scalar_select 0, %s7, %s5
  $region1: #{tpu_custom_call.1} parent=0
    #allocation3 [shape = 'u8[2048]{0}', space=vmem, size = 0x800, scoped, tag = 'input window, operand 0, single buffered']
    #allocation4 [shape = 's32[1]{0}', space=sflag, size = 0x4, scoped, tag = 'scoped memory for tpu_custom_call.1']
    #allocation5 [shape = 's32[1]{0}', space=sflag, size = 0x4, scoped, tag = 'scoped memory for tpu_custom_call.1']
    #allocation6 [shape = 'u8[16384]{0}', space=vmem, size = 0x4000, scoped, tag = 'input window, operand 1, single buffered']
    #allocation7 [shape = 's32[1]{0}', space=sflag, size = 0x4, scoped, tag = 'scoped memory for tpu_custom_call.1']
    #allocation8 [shape = 'u8[4096]{0}', space=vmem, size = 0x1000, scoped, tag = 'output window, operand 0, single buffered']
    %9 = vsyncpa [#allocation4], 0
    %10 = vsyncpa [#allocation7], 0
    %11 = vsyncpa [#allocation5], 0
    // Predicated region
    $region2: #{tpu_custom_call.1} parent=1 // pred_check
      _
    $region3: #{tpu_custom_call.1} parent=1 // pred_check_branch
      %13 = sbr.rel (0) target = $region5
    $region4: #{tpu_custom_call.1} parent=1 // pred_region
      %s15 = ssub.s32 64, 64
      %16 = vsyncadd [#allocation4], %s15
      %s18 = sshll.u32 [#allocation3], 4
      %s19 = int_to_ptr.vmem [resolvable:$true] %s18
      %21 = dma.hbm_to_vmem [thread:$0]  %s0, 64, %s19, [#allocation4]
    $region5: #{tpu_custom_call.1} parent=1 // pred_fallthru
      _
    // Predicated region
    $region6: #{tpu_custom_call.1} parent=1 // pred_check
      _
    $region7: #{tpu_custom_call.1} parent=1 // pred_check_branch
      %23 = sbr.rel (0) target = $region9
    $region8: #{tpu_custom_call.1} parent=1 // pred_region
      %s25 = ssub.s32 512, 512
      %26 = vsyncadd [#allocation7], %s25
      %s27 = sshll.u32 [#allocation6], 4
      %s28 = int_to_ptr.vmem [resolvable:$true] %s27
      %33 = dma.hbm_to_vmem [thread:$0]  %s1, 512, %s28, [#allocation7], 128, 128, 8
    $region9: #{tpu_custom_call.1} parent=1 // pred_fallthru
      _
    // Predicated region
    $region10: #{tpu_custom_call.1} parent=1 // pred_check
      _
    $region11: #{tpu_custom_call.1} parent=1 // pred_check_branch
      %35 = sbr.rel (0) target = $region13
    $region12: #{tpu_custom_call.1} parent=1 // pred_region
      _
    $region13: #{tpu_custom_call.1} parent=1 // pred_fallthru
      _
    // Predicated region
    $region14: #{tpu_custom_call.1} parent=1 // pred_check
      _
    $region15: #{tpu_custom_call.1} parent=1 // pred_check_branch
      %37 = sbr.rel (0) target = $region17
    $region16: #{tpu_custom_call.1} parent=1 // pred_region
      _
    $region17: #{tpu_custom_call.1} parent=1 // pred_fallthru
      _
    // Predicated region
    $region18: #{tpu_custom_call.1} parent=1 // pred_check
      _
    $region19: #{tpu_custom_call.1} parent=1 // pred_check_branch
      %39 = sbr.rel (0) target = $region21
    $region20: #{tpu_custom_call.1} parent=1 // pred_region
      %40 = dma.done [#allocation4], 64
    $region21: #{tpu_custom_call.1} parent=1 // pred_fallthru
      _
    // Predicated region
    $region22: #{tpu_custom_call.1} parent=1 // pred_check
      _
    $region23: #{tpu_custom_call.1} parent=1 // pred_check_branch
      %42 = sbr.rel (0) target = $region25
    $region24: #{tpu_custom_call.1} parent=1 // pred_region
      %43 = dma.done [#allocation7], 512
    $region25: #{tpu_custom_call.1} parent=1 // pred_fallthru
      _
    %p45 = scmp.eq.s32.totalorder 0, 0
    // Predicated region
    $region26: #{tpu_custom_call.1} parent=1 // pred_check
      %p46 = pneg %p45
    $region27: #{tpu_custom_call.1} parent=1 // pred_check_branch
      %48 = sbr.rel (%p46) target = $region29
    $region28: #{tpu_custom_call.1} parent=1 // pred_region
      %49 = vst [vmem:[#allocation2] sm:$0xff] 0.0
    $region29: #{tpu_custom_call.1} parent=1 // pred_fallthru
      _
    %v50 = vld [vmem:[#allocation2] sm:$0xff]
    %v51 = vld [vmem:[#allocation3] sm:$0xf]
    %v52 = vld [vmem:[#allocation6] sm:$0xff]
    %v53 = vld [vmem:[#allocation6 + $0x8] sm:$0xff]
    %v54 = vld [vmem:[#allocation6 + $0x10] sm:$0xff]
    %v55 = vld [vmem:[#allocation6 + $0x18] sm:$0xff]
    %v56 = vpack.c.bf16 %v53, %v52
    %v57 = vpack.c.bf16 %v55, %v54
    %vm58 = vcmask 261120
    %v60 = vsel %vm58, %v51, 0
    %62 = vmatprep.subr.bf16.mxu0 0
    %63 = vmatpush1.bf16.msra.mxu0 %v56
    %64 = vmatprep.subr.bf16.mxu0 0
    %65 = vmatpush1.bf16.msra.mxu0 %v57
    %66 = vmatprep.subr.bf16.mxu0 0
    %67 = vmatpush1.bf16.msra.mxu0 0
    %68 = vmatprep.subr.bf16.mxu0 0
    %69 = vmatpush1.bf16.msra.mxu0 0
    %70 = vmatprep.subr.bf16.mxu0 0
    %71 = vmatpush1.bf16.msra.mxu0 0
    %72 = vmatprep.subr.bf16.mxu0 0
    %73 = vmatpush1.bf16.msra.mxu0 0
    %74 = vmatprep.subr.bf16.mxu0 0
    %75 = vmatpush1.bf16.msra.mxu0 0
    %76 = vmatprep.subr.bf16.mxu0 0
    %77 = vmatpush1.bf16.msra.mxu0 0
    %78 = vmatprep.subr.bf16.mxu0 0
    %79 = vmatpush1.bf16.msra.mxu0 0
    %80 = vmatprep.subr.bf16.mxu0 0
    %81 = vmatpush1.bf16.msra.mxu0 0
    %82 = vmatprep.subr.bf16.mxu0 0
    %83 = vmatpush1.bf16.msra.mxu0 0
    %84 = vmatprep.subr.bf16.mxu0 0
    %85 = vmatpush1.bf16.msra.mxu0 0
    %86 = vmatprep.subr.bf16.mxu0 0
    %87 = vmatpush1.bf16.msra.mxu0 0
    %88 = vmatprep.subr.bf16.mxu0 0
    %89 = vmatpush1.bf16.msra.mxu0 0
    %90 = vmatprep.subr.bf16.mxu0 0
    %91 = vmatpush1.bf16.msra.mxu0 0
    %92 = vmatprep.subr.bf16.mxu0 0
    %93 = vmatpush1.bf16.msra.mxu0 0
    %94 = vmatprep.mubr.bf16.mxu0 0
    %95 = vmatmul.mubr.bf16.gmra.mrb[0].mxu0 %v60
    %v96 = vpop.f32.mrb[0].mxu0
    %v97 = vadd.f32 0.0, %v96
    %v98 = vpop.f32.mrb[0].mxu0
    %v99 = vpop.f32.mrb[0].mxu0
    %v100 = vpop.f32.mrb[0].mxu0
    %101 = vdwg.mxu0
    %v102 = vadd.f32 %v50, %v97
    %103 = vst [vmem:[#allocation2] sm:$0xff] %v102
    // Predicated region
    $region30: #{tpu_custom_call.1} parent=1 // pred_check
      %p104 = pneg %p45
    $region31: #{tpu_custom_call.1} parent=1 // pred_check_branch
      %106 = sbr.rel (%p104) target = $region33
    $region32: #{tpu_custom_call.1} parent=1 // pred_region
      %v107 = vld [vmem:[#allocation2] sm:$0xff]
      %v108 = vrot.slane %v107, 4
      %v109 = vadd.f32 %v107, %v108
      %v110 = vrot.slane %v109, 2
      %v111 = vadd.f32 %v109, %v110
      %v112 = vrot.slane %v111, 1
      %v113 = vadd.f32 %v111, %v112
      %v114 = vmul.f32 %v113, 0.125
      %v115 = vsub.f32 %v107, %v114
      %v116 = vmul.f32 %v115, %v115
      %v117 = vrot.slane %v116, 4
      %v118 = vadd.f32 %v116, %v117
      %v119 = vrot.slane %v118, 2
      %v120 = vadd.f32 %v118, %v119
      %v121 = vrot.slane %v120, 1
      %v122 = vadd.f32 %v120, %v121
      %v123 = vmul.f32 %v122, 0.125
      %v124 = vld [vmem:[%s2] sm:$0x1]
      %v125 = vadd.f32 %v123, 1e-05
      %v126 = vrsqrt.pop %v125
      %v127 = vmul.f32 %v124, %v126
      %v129 = vlaneseq
      %v130 = vshrl.u32 %v129, 7
      %v131 = vsub.s32 0, %v130
      %v132 = vrot.slane %v127, %v131
      %v134 = vmul.f32 %v115, %v132
      %v135 = vld [vmem:[%s3] sm:$0x1]
      %v137 = vlaneseq
      %v138 = vshrl.u32 %v137, 7
      %v139 = vsub.s32 0, %v138
      %v140 = vrot.slane %v135, %v139
      %v142 = vadd.f32 %v134, %v140
      %v143 = vmax.f32 %v142, 0.0
      %144 = vst [vmem:[#allocation8] sm:$0xff] %v143
    $region33: #{tpu_custom_call.1} parent=1 // pred_fallthru
      _
    // Predicated region
    $region34: #{tpu_custom_call.1} parent=1 // pred_check
      _
    $region35: #{tpu_custom_call.1} parent=1 // pred_check_branch
      %146 = sbr.rel (0) target = $region37
    $region36: #{tpu_custom_call.1} parent=1 // pred_region
      %s148 = ssub.s32 128, 128
      %149 = vsyncadd [#allocation5], %s148
      %s151 = sshll.u32 [#allocation8], 4
      %s152 = int_to_ptr.vmem [resolvable:$true] %s151
      %154 = dma.vmem_to_hbm [thread:$0]  %s152, 128, %s4, [#allocation5]
    $region37: #{tpu_custom_call.1} parent=1 // pred_fallthru
      _
    // Predicated region
    $region38: #{tpu_custom_call.1} parent=1 // pred_check
      _
    $region39: #{tpu_custom_call.1} parent=1 // pred_check_branch
      %156 = sbr.rel (0) target = $region41
    $region40: #{tpu_custom_call.1} parent=1 // pred_region
      %157 = dma.done [#allocation5], 128
    $region41: #{tpu_custom_call.1} parent=1 // pred_fallthru
      _
    %158 = vsyncpa [#allocation4], 1
    %159 = vsyncpa [#allocation7], 1
    %160 = vsyncpa [#allocation5], 1

</llo_original>
